<compile_context>
chip_gen: v5e
topology: v5e:2x2
jax: 0.10.0
libtpu: 0.0.40
codegen_flags: <defaults>
</compile_context>

<pallas_src>
import functools

import jax
import jax.numpy as jnp
from jax import lax
from jax.experimental import pallas as pl
from jax.experimental.pallas import tpu as pltpu


def _ce_sum_kernel(pred_ref, labels_ref, out_ref, acc_ref, *,
                   n_rows, block_n, ignore_index):
    step = pl.program_id(0)
    n_steps = pl.num_programs(0)

    # Reset the accumulator on the first tile.
    @pl.when(step == 0)
    def _():
        acc_ref[...] = jnp.zeros_like(acc_ref)

    logits = pred_ref[...].astype(jnp.float32)   # (bn, C) f32 math (v5e-safe)
    labels = labels_ref[...]                     # (bn, 1) int32

    # Numerically stable logsumexp on the shifted logits; the +m terms cancel
    # against the picked logit, so work entirely in the shifted domain.
    m = jnp.max(logits, axis=-1, keepdims=True)                       # (bn, 1)
    shifted = logits - m                                              # (bn, C)
    lse = jnp.log(jnp.sum(jnp.exp(shifted), axis=-1, keepdims=True))  # (bn, 1)

    # Gather the (shifted) logit at the label index via a select on a lane iota.
    col = lax.broadcasted_iota(jnp.int32, shifted.shape, 1)
    picked = jnp.sum(jnp.where(col == labels, shifted, 0.0),
                     axis=-1, keepdims=True)                          # (bn, 1)

    # Mask: rows past the true N (ragged tail of the last block, unpadded in HBM)
    # and rows whose label is ignore_index.
    row = lax.broadcasted_iota(jnp.int32, labels.shape, 0) + step * block_n
    valid = (row < n_rows) & (labels != ignore_index)
    acc_ref[...] += jnp.where(valid, lse - picked, 0.0)

    # Single cross-lane reduce + SMEM scalar store, once at the end.
    @pl.when(step == n_steps - 1)
    def _():
        out_ref[0, 0] = jnp.sum(acc_ref[...])


def _round_up(x, m):
    return ((x + m - 1) // m) * m


def cross_entropy(pred, labels, reduction="mean", block_n=None, ignore_index=-100):
    """Matches torch.nn.CrossEntropyLoss()(pred, labels) for 2-D logits, 1-D int labels."""
    N, C = pred.shape
    itemsize = jnp.dtype(pred.dtype).itemsize
    sublane = max(8, 32 // itemsize)        # 8 rows f32, 16 bf16, 32 int8/fp8

    # --- block size: ~4 MiB of pred per block, dtype-native sublane multiple ---
    if block_n is None:
        target_bytes = 4 << 20
        bn = target_bytes // max(1, C * itemsize)
    else:
        bn = int(block_n)
    bn = max(sublane, (bn // sublane) * sublane)
    bn = min(bn, _round_up(N, sublane))
    bn = max(bn, sublane)

    n_tiles = pl.cdiv(N, bn)                # no wrapper-side padding of pred

    labels2d = labels.astype(jnp.int32).reshape(N, 1)

    # --- VMEM budget: 2x double-buffered pred + f32 temporaries + headroom -----
    pred_block_bytes = bn * C * itemsize
    f32_block_bytes = bn * C * 4
    vmem_limit = int(min(56 << 20,
                         max(32 << 20,
                             2 * pred_block_bytes + 5 * f32_block_bytes + (2 << 20))))

    kernel = functools.partial(_ce_sum_kernel, n_rows=N, block_n=bn,
                               ignore_index=ignore_index)

    loss_sum = pl.pallas_call(
        kernel,
        out_shape=jax.ShapeDtypeStruct((1, 1), jnp.float32),
        grid_spec=pltpu.PrefetchScalarGridSpec(
            num_scalar_prefetch=0,
            grid=(n_tiles,),
            in_specs=[
                pl.BlockSpec((bn, C), lambda i: (i, 0)),
                pl.BlockSpec((bn, 1), lambda i: (i, 0)),
            ],
            out_specs=pl.BlockSpec((1, 1), lambda i: (0, 0),
                                   memory_space=pltpu.MemorySpace.SMEM),
            scratch_shapes=[pltpu.VMEM((bn, 1), jnp.float32)],
        ),
        compiler_params=pltpu.CompilerParams(
            dimension_semantics=("arbitrary",),
            vmem_limit_bytes=vmem_limit,
        ),
    )(pred, labels2d)[0, 0]

    if reduction == "sum":
        return loss_sum
    if reduction == "mean":
        denom = jnp.sum((labels.astype(jnp.int32) != ignore_index).astype(jnp.float32))
        return loss_sum / denom
    # TODO(synk): reduction='none' (per-row losses) not implemented in this kernel.
    raise NotImplementedError(f"reduction={reduction!r} not supported here")


def _reference_ce(pred, labels):
    logp = jax.nn.log_softmax(pred.astype(jnp.float32), axis=-1)
    nll = -jnp.take_along_axis(logp, labels[:, None].astype(jnp.int32), axis=-1)[:, 0]
    return jnp.mean(nll)


if __name__ == "__main__":
    key = jax.random.PRNGKey(0)
    k1, k2, k3, k4 = jax.random.split(key, 4)

    # Test 1: ragged N (in-kernel tail mask), multi-step grid, f32 logits,
    #         C not a multiple of 128.
    N, C = 50, 40
    pred = jax.random.normal(k1, (N, C), dtype=jnp.float32)
    labels = jax.random.randint(k2, (N,), 0, C, dtype=jnp.int32)
    loss = jax.block_until_ready(cross_entropy(pred, labels, block_n=16))
    ref = jax.block_until_ready(_reference_ce(pred, labels))
    assert jnp.allclose(loss, ref, rtol=1e-5, atol=1e-5), (loss, ref)

    # Test 2: bf16 streaming + default byte-sized block (single tile here).
    N2, C2 = 48, 32
    pred2 = jax.random.normal(k3, (N2, C2), dtype=jnp.bfloat16)
    labels2 = jax.random.randint(k4, (N2,), 0, C2, dtype=jnp.int32)
    loss2 = jax.block_until_ready(cross_entropy(pred2, labels2))
    ref2 = jax.block_until_ready(_reference_ce(pred2, labels2))
    assert jnp.allclose(loss2, ref2, rtol=1e-3, atol=1e-3), (loss2, ref2)

    print("KERNEL_OK")
</pallas_src>

<mosaic_0001>
module attributes {stable_mosaic.version = 11 : i64} {
  func.func @_ce_sum_kernel(%arg0: i32, %arg1: memref<16x40xf32, #tpu.memory_space<vmem>>, %arg2: memref<16x1xi32, #tpu.memory_space<vmem>>, %arg3: memref<1x1xf32, #tpu.memory_space<smem>>, %arg4: memref<16x1xf32, #tpu.memory_space<vmem>>) attributes {dimension_semantics = [#tpu.dimension_semantics<arbitrary>], iteration_bounds = array<i64: 4>, scalar_prefetch = 0 : i64, scratch_operands = 1 : i64, tpu.core_type = #tpu.core_type<tc>, window_params = [{transform_indices = @transform_0, window_bounds = array<i64: 16, 40>}, {transform_indices = @transform_1, window_bounds = array<i64: 16, 1>}, {transform_indices = @transform_2, window_bounds = array<i64: 1, 1>}]} {
    %c0_i32 = arith.constant 0 : i32
    %0 = arith.cmpi eq, %arg0, %c0_i32 : i32
    %1 = arith.extui %0 : i1 to i32
    %c0_i32_0 = arith.constant 0 : i32
    %2 = arith.cmpi ne, %1, %c0_i32_0 : i32
    scf.if %2 {
      %cst_13 = arith.constant 0.000000e+00 : f32
      %38 = vector.broadcast %cst_13 : f32 to vector<16x1xf32>
      %c0_14 = arith.constant 0 : index
      %c0_15 = arith.constant 0 : index
      %39 = vector.load %arg4[%c0_14, %c0_15] : memref<16x1xf32, #tpu.memory_space<vmem>>, vector<16x1xf32>
      tpu.vector_store %arg4[%c0_14, %c0_15], %38 {strides = array<i32>} : memref<16x1xf32, #tpu.memory_space<vmem>>, vector<16x1xf32>,
    } else {
    }
    %c0 = arith.constant 0 : index
    %c0_1 = arith.constant 0 : index
    %3 = vector.load %arg1[%c0, %c0_1] : memref<16x40xf32, #tpu.memory_space<vmem>>, vector<16x40xf32>
    %c0_2 = arith.constant 0 : index
    %c0_3 = arith.constant 0 : index
    %4 = vector.load %arg2[%c0_2, %c0_3] : memref<16x1xi32, #tpu.memory_space<vmem>>, vector<16x1xi32>
    %cst = arith.constant dense<0xFF800000> : vector<16xf32>
    %5 = vector.multi_reduction <maximumf>, %3, %cst [1] : vector<16x40xf32> to vector<16xf32>
    %6 = vector.shape_cast %5 : vector<16xf32> to vector<16x1xf32>
    %7 = vector.broadcast %6 : vector<16x1xf32> to vector<16x40xf32>
    %8 = arith.subf %3, %7 : vector<16x40xf32>
    %9 = math.exp %8 : vector<16x40xf32>
    %cst_4 = arith.constant dense<0.000000e+00> : vector<16xf32>
    %10 = vector.multi_reduction <add>, %9, %cst_4 [1] : vector<16x40xf32> to vector<16xf32>
    %11 = vector.shape_cast %10 : vector<16xf32> to vector<16x1xf32>
    %12 = math.log %11 : vector<16x1xf32>
    %13 = tpu.iota {dimensions = array<i32: 1>} : vector<16x40xi32>
    %14 = vector.broadcast %4 : vector<16x1xi32> to vector<16x40xi32>
    %15 = arith.cmpi eq, %13, %14 : vector<16x40xi32>
    %cst_5 = arith.constant 0.000000e+00 : f32
    %16 = vector.broadcast %cst_5 : f32 to vector<16x40xf32>
    %17 = arith.select %15, %8, %16 : vector<16x40xi1>, vector<16x40xf32>
    %cst_6 = arith.constant dense<0.000000e+00> : vector<16xf32>
    %18 = vector.multi_reduction <add>, %17, %cst_6 [1] : vector<16x40xf32> to vector<16xf32>
    %19 = vector.shape_cast %18 : vector<16xf32> to vector<16x1xf32>
    %20 = tpu.iota {dimensions = array<i32: 0>} : vector<16x1xi32>
    %c16_i32 = arith.constant 16 : i32
    %21 = arith.muli %arg0, %c16_i32 : i32
    %22 = vector.broadcast %21 : i32 to vector<16x1xi32>
    %23 = arith.addi %20, %22 : vector<16x1xi32>
    %c50_i32 = arith.constant 50 : i32
    %24 = vector.broadcast %c50_i32 : i32 to vector<16x1xi32>
    %25 = arith.cmpi slt, %23, %24 : vector<16x1xi32>
    %c-100_i32 = arith.constant -100 : i32
    %26 = vector.broadcast %c-100_i32 : i32 to vector<16x1xi32>
    %27 = arith.cmpi ne, %4, %26 : vector<16x1xi32>
    %28 = arith.andi %25, %27 : vector<16x1xi1>
    %c0_7 = arith.constant 0 : index
    %c0_8 = arith.constant 0 : index
    %29 = vector.load %arg4[%c0_7, %c0_8] : memref<16x1xf32, #tpu.memory_space<vmem>>, vector<16x1xf32>
    %30 = arith.subf %12, %19 : vector<16x1xf32>
    %cst_9 = arith.constant 0.000000e+00 : f32
    %31 = vector.broadcast %cst_9 : f32 to vector<16x1xf32>
    %32 = arith.select %28, %30, %31 : vector<16x1xi1>, vector<16x1xf32>
    %33 = arith.addf %29, %32 : vector<16x1xf32>
    %c0_10 = arith.constant 0 : index
    %c0_11 = arith.constant 0 : index
    %34 = vector.load %arg4[%c0_10, %c0_11] : memref<16x1xf32, #tpu.memory_space<vmem>>, vector<16x1xf32>
    tpu.vector_store %arg4[%c0_10, %c0_11], %33 {strides = array<i32>} : memref<16x1xf32, #tpu.memory_space<vmem>>, vector<16x1xf32>,
    %c3_i32 = arith.constant 3 : i32
    %35 = arith.cmpi eq, %arg0, %c3_i32 : i32
    %36 = arith.extui %35 : i1 to i32
    %c0_i32_12 = arith.constant 0 : i32
    %37 = arith.cmpi ne, %36, %c0_i32_12 : i32
    scf.if %37 {
      %c0_13 = arith.constant 0 : index
      %c0_14 = arith.constant 0 : index
      %38 = vector.load %arg4[%c0_13, %c0_14] : memref<16x1xf32, #tpu.memory_space<vmem>>, vector<16x1xf32>
      %39 = vector.shape_cast %38 : vector<16x1xf32> to vector<1x16x1xf32>
      %cst_15 = arith.constant dense<0.000000e+00> : vector<1xf32>
      %40 = vector.multi_reduction <add>, %39, %cst_15 [1, 2] : vector<1x16x1xf32> to vector<1xf32>
      %41 = vector.shape_cast %40 : vector<1xf32> to vector<1x1x1xf32>
      %42 = vector.extract %41[0, 0, 0] : f32 from vector<1x1x1xf32>
      %c0_16 = arith.constant 0 : index
      %c0_17 = arith.constant 0 : index
      %43 = memref.load %arg3[%c0_16, %c0_17] : memref<1x1xf32, #tpu.memory_space<smem>>
      memref.store %42, %arg3[%c0_16, %c0_17] : memref<1x1xf32, #tpu.memory_space<smem>>
    } else {
    }
    return
  }
  func.func @transform_0(%arg0: i32) -> (i32, i32) {
    %c0_i32 = arith.constant 0 : i32
    %c0_i32_0 = arith.constant 0 : i32
    return %arg0, %c0_i32 : i32, i32
  }
  func.func @transform_1(%arg0: i32) -> (i32, i32) {
    %c0_i32 = arith.constant 0 : i32
    %c0_i32_0 = arith.constant 0 : i32
    return %arg0, %c0_i32 : i32, i32
  }
  func.func @transform_2(%arg0: i32) -> (i32, i32) {
    %c0_i32 = arith.constant 0 : i32
    %c0_i32_0 = arith.constant 0 : i32
    %c0_i32_1 = arith.constant 0 : i32
    return %c0_i32, %c0_i32_0 : i32, i32
  }
}

</mosaic_0001>

<llo_original>
// kernel: tpu_custom_call.1
$region0: #{tpu_custom_call.1}
  #allocation0 [shape = 'u32[]', space=smem, size = 0x4, offset = 0x4, fixed_abs, tag = 'smem constant byte address 0x4 - core index']
  #allocation1 [shape = 'u32[72,128]{1,0:T(1,128)}', space=vmem, size = 0x9000, scoped, tag = 'internal scratch']
  #allocation2 [shape = 'f32[16,1]{1,0:T(8,128)}', space=vmem, size = 0x2000, scoped, tag = 'scratch operand']
  %s0 = inlined_call_operand.vmem [shape: f32[50,40], index: 0, kind: input, shape index: {}]
  %s1 = inlined_call_operand.vmem [shape: s32[50,1], index: 1, kind: input, shape index: {}]
  %s2 = inlined_call_operand.hbm [shape: f32[1,1], index: 2, kind: output, shape index: {}]
  %s3 = sld [smem:[#allocation0]]
  $region49: #{tpu_custom_call.1} parent=0
    _
  %s5 = ssub.s32 1, %s3
  %s6 = scalar_select 0, %s5, %s3
  $region1: #{tpu_custom_call.1} parent=0
    #allocation3 [shape = 'u8[512]{0}', space=smem, size = 0x200, scoped, tag = 'output window, operand 0, single buffered']
    #allocation4 [shape = 's32[2]{0}', space=sflag, size = 0x8, scoped, tag = 'scoped memory for tpu_custom_call.1']
    %7 = vsyncpa [#allocation4], 0
    loop: start=0, step=1, limit=6
    $region2: #{tpu_custom_call.1} parent=1 // loop_pre_header
      _
    $region3: #{tpu_custom_call.1} parent=1 // loop_header
      %s9 = sphi 0, %s13
      %p10 = scmp.ge.s32.totalorder %s9, 6
      %s19 = sphi 0, %s21
      %s22 = sphi 0, %s19
      %s23 = sphi 0, %s22
      %s39 = sphi 0, %s23
      %s45 = sphi 0, %s47
      %s48 = sphi 0, %s45
      %s49 = sphi 0, %s48
      %s65 = sphi 0, %s49
      %s69 = sphi 0, %s69
      %s71 = sphi 0, %s69
      %s72 = sphi 0, %s71
      %s86 = sphi 0, %s72
    $region4: #{tpu_custom_call.1} parent=1 // loop_header_branch
      %12 = sbr.rel (%p10) target = $region8
    $region5: #{tpu_custom_call.1} parent=1 // loop_body
      %s14 = ssub.s32 %s9, 1
      %s15 = ssub.s32 %s9, 2
      %s16 = sadd.s32 %s9, 1
      %s17 = ssub.s32 %s9, %s16
      %p18 = scmp.eq.s32.totalorder %s17, 0
      %s20 = sadd.s32 %s19, 1
      %s21 = scalar_select %p18, %s19, %s20
      %p24 = pneg %p18
      %p25 = scmp.eq.s32.totalorder %s9, 3
      %p26 = por %p24, %p25
      %p27 = scmp.ne.s32.totalorder %s19, %s22
      %p28 = scmp.eq.s32.totalorder %s9, 0
      %p29 = por %p27, %p28
      %p30 = scmp.ne.s32.totalorder %s19, %s22
      %p31 = scmp.eq.s32.totalorder %s14, 3
      %p32 = por %p30, %p31
      %p33 = scmp.ne.s32.totalorder %s22, %s23
      %p34 = scmp.eq.s32.totalorder %s14, 0
      %p35 = por %p33, %p34
      %p36 = scmp.ne.s32.totalorder %s22, %s23
      %p37 = scmp.eq.s32.totalorder %s15, 3
      %p38 = por %p36, %p37
      %p40 = scmp.ne.s32.totalorder %s23, %s39
      %p41 = scmp.eq.s32.totalorder %s15, 0
      %p42 = por %p40, %p41
      %s43 = ssub.s32 %s9, %s16
      %p44 = scmp.eq.s32.totalorder %s43, 0
      %s46 = sadd.s32 %s45, 1
      %s47 = scalar_select %p44, %s45, %s46
      %p50 = pneg %p44
      %p51 = scmp.eq.s32.totalorder %s9, 3
      %p52 = por %p50, %p51
      %p53 = scmp.ne.s32.totalorder %s45, %s48
      %p54 = scmp.eq.s32.totalorder %s9, 0
      %p55 = por %p53, %p54
      %p56 = scmp.ne.s32.totalorder %s45, %s48
      %p57 = scmp.eq.s32.totalorder %s14, 3
      %p58 = por %p56, %p57
      %p59 = scmp.ne.s32.totalorder %s48, %s49
      %p60 = scmp.eq.s32.totalorder %s14, 0
      %p61 = por %p59, %p60
      %p62 = scmp.ne.s32.totalorder %s48, %s49
      %p63 = scmp.eq.s32.totalorder %s15, 3
      %p64 = por %p62, %p63
      %p66 = scmp.ne.s32.totalorder %s49, %s65
      %p67 = scmp.eq.s32.totalorder %s15, 0
      %p68 = por %p66, %p67
      %s70 = sadd.s32 %s69, 1
      %p73 = scmp.eq.s32.totalorder %s9, 3
      %p74 = scmp.ne.s32.totalorder %s69, %s71
      %p75 = scmp.eq.s32.totalorder %s9, 0
      %p76 = por %p74, %p75
      %p77 = scmp.ne.s32.totalorder %s69, %s71
      %p78 = scmp.eq.s32.totalorder %s14, 3
      %p79 = por %p77, %p78
      %p80 = scmp.ne.s32.totalorder %s71, %s72
      %p81 = scmp.eq.s32.totalorder %s14, 0
      %p82 = por %p80, %p81
      %p83 = scmp.ne.s32.totalorder %s71, %s72
      %p84 = scmp.eq.s32.totalorder %s15, 3
      %p85 = por %p83, %p84
      %p87 = scmp.ne.s32.totalorder %s72, %s86
      %p88 = scmp.eq.s32.totalorder %s15, 0
      %p89 = por %p87, %p88
      %p90 = scmp.le.s32.totalorder 1, %s9
      %p91 = scmp.lt.s32.totalorder %s9, 5
      %p92 = pnand %p90, %p91
      %p93 = pneg %p92
      // Predicated region
      $region9: #{tpu_custom_call.1} parent=5 // pred_check
        _
      $region10: #{tpu_custom_call.1} parent=5 // pred_check_branch
        %95 = sbr.rel (%p92) target = $region12
      $region11: #{tpu_custom_call.1} parent=5 // pred_region
        %s96 = ssub.s32 %s9, 1
      $region12: #{tpu_custom_call.1} parent=5 // pred_fallthru
        _
      %p97 = scmp.lt.s32.totalorder %s9, 4
      // Predicated region
      $region13: #{tpu_custom_call.1} parent=5 // pred_check
        %p98 = pneg %p97
      $region14: #{tpu_custom_call.1} parent=5 // pred_check_branch
        %100 = sbr.rel (%p98) target = $region16
      $region15: #{tpu_custom_call.1} parent=5 // pred_region
        // Predicated region
        $region17: #{tpu_custom_call.1} parent=15 // pred_check
          %p101 = pneg %p29
        $region18: #{tpu_custom_call.1} parent=15 // pred_check_branch
          %103 = sbr.rel (%p101) target = $region20
        $region19: #{tpu_custom_call.1} parent=15 // pred_region
          %s104 = smul.u32 2, %s9
          %s105 = ssub.s32 7, %s104
          %p106 = scmp.lt.s32.totalorder %s105, 2
          %s107 = scalar_select %p106, %s105, 2
          %s108 = smul.u32 8, %s107
          %p109 = scmp.lt.s32.totalorder %s104, 6
          %s110 = scalar_select %p109, %s104, 6
          %s111 = smul.addr %s110, 8
          %s112 = scalar_lea.vmem %s0, %s111
          %s113 = smul.u32 2, %s9
          %s114 = ssub.s32 7, %s113
          %p115 = scmp.lt.s32.totalorder %s114, 2
          %s116 = scalar_select %p115, %s114, 2
          %s117 = smul.u32 8, %s116
        $region20: #{tpu_custom_call.1} parent=15 // pred_fallthru
          _
        // Predicated region
        $region21: #{tpu_custom_call.1} parent=15 // pred_check
          %p118 = pneg %p55
        $region22: #{tpu_custom_call.1} parent=15 // pred_check_branch
          %120 = sbr.rel (%p118) target = $region24
        $region23: #{tpu_custom_call.1} parent=15 // pred_region
          %s121 = smul.u32 2, %s9
          %s122 = ssub.s32 7, %s121
          %p123 = scmp.lt.s32.totalorder %s122, 2
          %s124 = scalar_select %p123, %s122, 2
          %s125 = smul.u32 8, %s124
          %p126 = scmp.lt.s32.totalorder %s121, 6
          %s127 = scalar_select %p126, %s121, 6
          %s128 = smul.addr %s127, 8
          %s129 = scalar_lea.vmem %s1, %s128
          %s130 = smul.u32 2, %s9
          %s131 = ssub.s32 7, %s130
          %p132 = scmp.lt.s32.totalorder %s131, 2
          %s133 = scalar_select %p132, %s131, 2
          %s134 = smul.u32 8, %s133
        $region24: #{tpu_custom_call.1} parent=15 // pred_fallthru
          _
      $region16: #{tpu_custom_call.1} parent=5 // pred_fallthru
        _
      %p135 = scmp.le.s32.totalorder 1, %s9
      %p136 = scmp.lt.s32.totalorder %s9, 5
      %p137 = pnand %p135, %p136
      %p138 = pneg %p137
      // Predicated region
      $region25: #{tpu_custom_call.1} parent=5 // pred_check
        _
      $region26: #{tpu_custom_call.1} parent=5 // pred_check_branch
        %140 = sbr.rel (%p137) target = $region28
      $region27: #{tpu_custom_call.1} parent=5 // pred_region
        %s141 = ssub.s32 %s9, 1
        %s142 = smul.u32 2, %s14
        %s143 = ssub.s32 7, %s142
        %p144 = scmp.lt.s32.totalorder %s143, 2
        %s145 = scalar_select %p144, %s143, 2
        %s146 = smul.u32 8, %s145
        %p147 = scmp.lt.s32.totalorder %s142, 6
        %s148 = scalar_select %p147, %s142, 6
        %s149 = smul.addr %s148, 8
        %s150 = scalar_lea.vmem %s0, %s149
        %p151 = pneg %p35
        %p152 = pneg %p32
        %s153 = smul.u32 2, %s14
        %s154 = ssub.s32 7, %s153
        %p155 = scmp.lt.s32.totalorder %s154, 2
        %s156 = scalar_select %p155, %s154, 2
        %s157 = smul.u32 8, %s156
        %p158 = scmp.lt.s32.totalorder %s153, 6
        %s159 = scalar_select %p158, %s153, 6
        %s160 = smul.addr %s159, 8
        %s161 = scalar_lea.vmem %s1, %s160
        %p162 = pneg %p61
        %p163 = pneg %p58
        %p164 = pneg %p82
        %p165 = pneg %p79
        %s166 = smul.u32 2, %s14
        %s167 = ssub.s32 7, %s166
        %p168 = scmp.lt.s32.totalorder %s167, 2
        %s169 = scalar_select %p168, %s167, 2
        %s170 = smul.u32 8, %s169
        %p171 = scmp.lt.s32.totalorder %s166, 6
        %s172 = scalar_select %p171, %s166, 6
        %s173 = smul.addr %s172, 8
        %s174 = scalar_lea.vmem %s0, %s173
        %s175 = smul.u32 2, %s14
        %s176 = ssub.s32 7, %s175
        %p177 = scmp.lt.s32.totalorder %s176, 2
        %s178 = scalar_select %p177, %s176, 2
        %s179 = smul.u32 8, %s178
        %s180 = smul.u32 2, %s14
        %s181 = ssub.s32 7, %s180
        %p182 = scmp.lt.s32.totalorder %s181, 2
        %s183 = scalar_select %p182, %s181, 2
        %s184 = smul.u32 8, %s183
        %p185 = scmp.lt.s32.totalorder %s180, 6
        %s186 = scalar_select %p185, %s180, 6
        %s187 = smul.addr %s186, 8
        %s188 = scalar_lea.vmem %s1, %s187
        %s189 = smul.u32 2, %s14
        %s190 = ssub.s32 7, %s189
        %p191 = scmp.lt.s32.totalorder %s190, 2
        %s192 = scalar_select %p191, %s190, 2
        %s193 = smul.u32 8, %s192
        %p194 = scmp.eq.s32.totalorder %s14, 0
        // Predicated region
        $region29: #{tpu_custom_call.1} parent=27 // pred_check
          %p195 = pneg %p194
        $region30: #{tpu_custom_call.1} parent=27 // pred_check_branch
          %197 = sbr.rel (%p195) target = $region32
        $region31: #{tpu_custom_call.1} parent=27 // pred_region
          %vm198 = vcmask 7168
          %199 = vst.msk [vmem:[#allocation2] sm:$0xff] %vm198, 0.0
          %200 = vst.msk [vmem:[#allocation2 + $0x8] sm:$0xff] %vm198, 0.0
        $region32: #{tpu_custom_call.1} parent=27 // pred_fallthru
          _
        %v201 = vld [vmem:[%s174] sm:$0xff]
        %v202 = vld [vmem:[%s174 + $0x8] sm:$0xff]
        %v203 = vld [vmem:[%s188] sm:$0xff]
        %v204 = vld [vmem:[%s188 + $0x8] sm:$0xff]
        %vm205 = vcmask 326656
        %v206 = vsel %vm205, %v201, -inf
        %207 = vmax.xlane.f32.xlu0 %v206
        %v208 = vpop.xlane.xlu0 %207
        %v209 = vsel %vm205, %v202, -inf
        %210 = vmax.xlane.f32.xlu0 %v209
        %v211 = vpop.xlane.xlu0 %210
        %v212 = vsub.f32 %v201, %v208
        %v213 = vsub.f32 %v202, %v211
        %v214 = vmul.f32 %v212, 1.442695
        %v215 = vpow.pop %v214
        %v216 = vmul.f32 %v213, 1.442695
        %v217 = vpow.pop %v216
        %v218 = vsel %vm205, %v215, 0.0
        %219 = vadd.xlane.f32.xlu0 %v218
        %v220 = vpop.xlane.xlu0 %219
        %v221 = vsel %vm205, %v217, 0.0
        %222 = vadd.xlane.f32.xlu0 %v221
        %v223 = vpop.xlane.xlu0 %222
        %v224 = vlog2.pop %v220
        %v225 = vmul.f32 %v224, 0.6931472
        %v226 = vlog2.pop %v223
        %v227 = vmul.f32 %v226, 0.6931472
        %v228 = vlaneseq
        %v229 = vand.u32 %v228, 127
        %230 = vset.pattern.permute.xlu0 0
        %231 = vperm.xlu0 %230, %v203
        %v232 = vpop.permute.xlu0 %231
        %233 = vset.pattern.permute.xlu0 0
        %234 = vperm.xlu0 %233, %v204
        %v235 = vpop.permute.xlu0 %234
        %vm236 = vcmp.eq.s32.totalorder %v229, %v232
        %vm237 = vcmp.eq.s32.totalorder %v229, %v235
        %v238 = vsel %vm236, %v212, 0.0
        %v239 = vsel %vm237, %v213, 0.0
        %v240 = vsel %vm205, %v238, 0.0
        %241 = vadd.xlane.f32.xlu0 %v240
        %v242 = vpop.xlane.xlu0 %241
        %v243 = vsel %vm205, %v239, 0.0
        %244 = vadd.xlane.f32.xlu0 %v243
        %v245 = vpop.xlane.xlu0 %244
        %v246 = vlaneseq
        %v247 = vshrl.u32 %v246, 7
        %v248 = vadd.s32 %v247, 8
        %s249 = smul.u32 %s14, 16
        %v250 = vstv %s249
        %v251 = vadd.s32 %v247, %v250
        %v252 = vadd.s32 %v248, %v250
        %vm253 = vcmp.lt.s32.totalorder %v251, 50
        %vm254 = vcmp.lt.s32.totalorder %v252, 50
        %vm255 = vcmp.ne.s32.totalorder %v203, 4294967196
        %vm256 = vcmp.ne.s32.totalorder %v204, 4294967196
        %vm257 = vmand %vm253, %vm255
        %vm258 = vmand %vm254, %vm256
        %v259 = vld [vmem:[#allocation2] sm:$0xff]
        %v260 = vld [vmem:[#allocation2 + $0x8] sm:$0xff]
        %v261 = vsub.f32 %v225, %v242
        %v262 = vsub.f32 %v227, %v245
        %v263 = vsel %vm257, %v261, 0.0
        %v264 = vsel %vm258, %v262, 0.0
        %v265 = vadd.f32 %v259, %v263
        %v266 = vadd.f32 %v260, %v264
        %vm267 = vcmask 7168
        %268 = vst.msk [vmem:[#allocation2] sm:$0xff] %vm267, %v265
        %269 = vst.msk [vmem:[#allocation2 + $0x8] sm:$0xff] %vm267, %v266
        %p270 = scmp.eq.s32.totalorder %s14, 3
        // Predicated region
        $region33: #{tpu_custom_call.1} parent=27 // pred_check
          %p271 = pneg %p270
        $region34: #{tpu_custom_call.1} parent=27 // pred_check_branch
          %273 = sbr.rel (%p271) target = $region36
        $region35: #{tpu_custom_call.1} parent=27 // pred_region
          %v274 = vld [vmem:[#allocation2] sm:$0xff]
          %v275 = vld [vmem:[#allocation2 + $0x8] sm:$0xff]
          %v276 = vsel %vm267, %v274, 0.0
          %v277 = vsel %vm267, %v275, 0.0
          %v278 = vadd.f32 %v276, %v277
          %279 = vadd.xlane.f32.xlu0 %v278
          %v280 = vpop.xlane.xlu0 %279
          %v281 = vrot.slane %v280, 4
          %v282 = vadd.f32 %v280, %v281
          %v283 = vrot.slane %v282, 2
          %v284 = vadd.f32 %v282, %v283
          %v285 = vrot.slane %v284, 1
          %v286 = vadd.f32 %v284, %v285
          %s287 = vtos %v286
          %s288 = scalar_lea.smem [#allocation3], 0
          %289 = sst [smem:[%s288]] %s287
        $region36: #{tpu_custom_call.1} parent=27 // pred_fallthru
          _
        // Predicated region
        $region37: #{tpu_custom_call.1} parent=27 // pred_check
          %p290 = pneg %p79
        $region38: #{tpu_custom_call.1} parent=27 // pred_check_branch
          %292 = sbr.rel (%p290) target = $region40
        $region39: #{tpu_custom_call.1} parent=27 // pred_region
          %294 = vsyncadd [#allocation4], 0
          %s296 = sshll.u32 %s2, 4
          %s297 = int_to_ptr.hbm [resolvable:$true] %s296
          %299 = dma.smem_to_hbm [#allocation3], 16, %s297, [#allocation4]
        $region40: #{tpu_custom_call.1} parent=27 // pred_fallthru
          _
        // Predicated region
        $region41: #{tpu_custom_call.1} parent=27 // pred_check
          %p300 = pneg %p79
        $region42: #{tpu_custom_call.1} parent=27 // pred_check_branch
          %302 = sbr.rel (%p300) target = $region44
        $region43: #{tpu_custom_call.1} parent=27 // pred_region
          %304 = dma.done [#allocation4], 16
        $region44: #{tpu_custom_call.1} parent=27 // pred_fallthru
          _
        %305 = sfence
      $region28: #{tpu_custom_call.1} parent=5 // pred_fallthru
        _
      %p306 = scmp.le.s32.totalorder 2, %s9
      // Predicated region
      $region45: #{tpu_custom_call.1} parent=5 // pred_check
        %p307 = pneg %p306
      $region46: #{tpu_custom_call.1} parent=5 // pred_check_branch
        %309 = sbr.rel (%p307) target = $region48
      $region47: #{tpu_custom_call.1} parent=5 // pred_region
        %s310 = ssub.s32 %s9, 2
      $region48: #{tpu_custom_call.1} parent=5 // pred_fallthru
        _
    $region6: #{tpu_custom_call.1} parent=1 // loop_footer
      %s13 = sadd.s32 1, %s9
    $region7: #{tpu_custom_call.1} parent=1 // loop_footer_branch
      %8 = sbr.rel target = $region3
    $region8: #{tpu_custom_call.1} parent=1 // loop_exit
      _
    %311 = vsyncpa [#allocation4], 1
    %s312 = scalar_lea.sflag [#allocation4], 1
    %313 = vsyncpa %s312, 1

</llo_original>
